<compile_context>
chip_gen: v7x
topology: tpu7x:2x2x1
jax: 0.10.0
libtpu: 0.0.40
codegen_flags: <defaults>
</compile_context>

<pallas_src>
import functools
import math

import jax
import jax.numpy as jnp
from jax.experimental import pallas as pl
from jax.experimental.pallas import tpu as pltpu


_MASK_VALUE = -0.7 * float(jnp.finfo(jnp.float32).max)   # finite "-inf"


def _pick_row_tile(n_rows: int) -> int:
    """Largest convenient row tile (256 first: v7x 64 MiB VMEM friendly)."""
    for t in (256, 512, 128):
        if n_rows % t == 0:
            return t
    return n_rows   # full extent: always a legal block shape


def _vmem_limit_bytes(est_bytes: int) -> int:
    """Honest VMEM request, capped at ~90% of physical VMEM (64 MiB on v7x,
    128 MiB on v5e/v6e)."""
    try:
        cap = int(pltpu.get_tpu_info().vmem_capacity_bytes)
    except Exception:   # fall back if the query is unavailable
        cap = 64 * 1024 * 1024
    cap = int(0.9 * min(cap, 128 * 1024 * 1024))
    # TODO(synk): if est_bytes exceeds cap at production shapes, shrink the row
    # tile / add key-axis tiling instead of relying on the clamp.
    return int(min(max(2 * est_bytes, 32 * 1024 * 1024), cap))


# --------------------------------------------------------------------------
# Kernel 1: dense linear layer  y = x @ W + b  (fp32 accumulation).
# --------------------------------------------------------------------------
def _linear_kernel(x_ref, w_ref, b_ref, o_ref, *, compute_dtype):
    x = x_ref[0].astype(compute_dtype)          # (tr, E_in)
    w = w_ref[...].astype(compute_dtype)        # (E_in, E_out) — VMEM-resident
    y = jnp.dot(x, w, preferred_element_type=jnp.float32) + b_ref[...]
    o_ref[0] = y.astype(o_ref.dtype)


def _linear(x, w_t, b, *, out_dtype, compute_dtype):
    """y[b] = x[b] @ w_t + b.  w_t is (E_in, E_out), already transposed."""
    B, N, E_in = x.shape
    E_out = w_t.shape[1]
    tr = _pick_row_tile(N)
    n_rt = N // tr

    itm_x = x.dtype.itemsize
    itm_o = jnp.dtype(out_dtype).itemsize
    est = (2 * tr * (E_in * itm_x + E_out * itm_o)       # double-buffered x / out
           + E_in * E_out * w_t.dtype.itemsize + 4 * E_out   # resident W / b
           + 4 * tr * (E_in + 2 * E_out))                 # fp32 / cast temporaries

    kernel = functools.partial(_linear_kernel, compute_dtype=compute_dtype)
    return pl.pallas_call(
        kernel,
        out_shape=jax.ShapeDtypeStruct((B, N, E_out), out_dtype),
        grid_spec=pltpu.PrefetchScalarGridSpec(
            num_scalar_prefetch=0,
            grid=(B, n_rt),
            in_specs=[
                pl.BlockSpec((1, tr, E_in), lambda bi, ri: (bi, ri, 0)),
                # Constant index_maps -> weight & bias DMA'd once, kept resident.
                pl.BlockSpec((E_in, E_out), lambda bi, ri: (0, 0)),
                pl.BlockSpec((1, E_out), lambda bi, ri: (0, 0)),
            ],
            out_specs=pl.BlockSpec((1, tr, E_out), lambda bi, ri: (bi, ri, 0)),
        ),
        compiler_params=pltpu.CompilerParams(
            dimension_semantics=("parallel", "parallel"),
            vmem_limit_bytes=_vmem_limit_bytes(est)),
    )(x, w_t, b)


# --------------------------------------------------------------------------
# Kernel 2: per (batch*head, q-tile) attention: scores -> softmax -> PV.
# --------------------------------------------------------------------------
def _attn_head_kernel(q_ref, k_ref, v_ref, o_ref, *,
                      q_tile, apply_mask, approx_recip, compute_dtype):
    q = q_ref[0].astype(compute_dtype)          # (tq, Dh); 1/sqrt(Dh) pre-folded
    k = k_ref[0].astype(compute_dtype)          # (N_k, Dh)
    v = v_ref[0].astype(compute_dtype)          # (N_k, Dh)

    scores = jax.lax.dot_general(
        q, k, dimension_numbers=(((1,), (1,)), ((), ())),
        preferred_element_type=jnp.float32)     # (tq, N_k) fp32

    if apply_mask:
        # torch.triu(..., diagonal=1) causal mask; finite fill avoids NaN if a
        # row were ever fully masked.
        q_off = pl.program_id(1) * q_tile
        row = q_off + jax.lax.broadcasted_iota(jnp.int32, scores.shape, 0)
        col = jax.lax.broadcasted_iota(jnp.int32, scores.shape, 1)
        scores = jnp.where(col > row, _MASK_VALUE, scores)

    # Numerically stable softmax over keys (fp32 statistics).
    m = jnp.max(scores, axis=-1, keepdims=True)
    p = jnp.exp(scores - m)
    denom = jnp.sum(p, axis=-1, keepdims=True)
    inv = pl.reciprocal(denom, approx=True) if approx_recip else 1.0 / denom
    attn_w = (p * inv).astype(compute_dtype)    # bf16 operand for the PV matmul

    attn = jnp.dot(attn_w, v, preferred_element_type=jnp.float32)   # (tq, Dh)
    o_ref[0] = attn.astype(o_ref.dtype)


# --------------------------------------------------------------------------
# Wrapper: full MultiHeadAttention forward.
# --------------------------------------------------------------------------
def multi_head_attention(queries, keys, values, params, *, n_heads,
                         apply_mask=False, compute_dtype=jnp.bfloat16,
                         approx_softmax_recip=True):
    B, N_q, E = queries.shape
    N_k = keys.shape[1]
    N_v = values.shape[1]
    assert E % n_heads == 0, "embed_dim must be divisible by n_heads"
    assert N_k == N_v, "attn_weights @ V requires matching key/value lengths"
    d_head = E // n_heads
    if apply_mask:
        assert N_q == N_k, "causal mask requires N_q == N_k (self-attention)"

    compute_dtype = jnp.dtype(compute_dtype)
    inter_dtype = (compute_dtype if compute_dtype == jnp.dtype(jnp.bfloat16)
                   else queries.dtype)
    scale = 1.0 / math.sqrt(d_head)

    # PyTorch Linear stores W as (out, in); y = x @ W.T + b.  Pre-transpose in
    # the wrapper; fold the 1/sqrt(Dh) softmax scale into the Q projection.
    wq_t = params['wq'].T * scale
    bq_s = (params['bq'] * scale).reshape(1, E)
    wk_t = params['wk'].T
    bk = params['bk'].reshape(1, E)
    wv_t = params['wv'].T
    bv = params['bv'].reshape(1, E)
    wo_t = params['wo'].T
    bo = params['bo'].reshape(1, E)

    # Input projections: one full-width (rows, E) @ (E, E) MXU matmul each,
    # computed exactly once per token (never per q-tile / per head).
    qp = _linear(queries, wq_t, bq_s, out_dtype=inter_dtype, compute_dtype=compute_dtype)
    kp = _linear(keys, wk_t, bk, out_dtype=inter_dtype, compute_dtype=compute_dtype)
    vp = _linear(values, wv_t, bv, out_dtype=inter_dtype, compute_dtype=compute_dtype)

    # Head-major relayout (wrapper-side layout plumbing, plain XLA) so per-head
    # BlockSpec slices have full-dim trailing axes (legal for any Dh).
    def to_head_major(x, n):
        return jnp.transpose(x.reshape(B, n, n_heads, d_head),
                             (0, 2, 1, 3)).reshape(B * n_heads, n, d_head)

    qph = to_head_major(qp, N_q)      # (B*H, N_q, Dh)
    kph = to_head_major(kp, N_k)
    vph = to_head_major(vp, N_v)

    tq = _pick_row_tile(N_q)
    n_qt = N_q // tq

    itm = jnp.dtype(inter_dtype).itemsize
    est = (2 * itm * d_head * (2 * tq + N_k + N_v)            # dbl-buffered q/k/v/out
           + 4 * (2 * tq * N_k + 4 * tq * d_head + 2 * N_k * d_head))  # fp32 temps

    kernel = functools.partial(
        _attn_head_kernel, q_tile=tq, apply_mask=apply_mask,
        approx_recip=approx_softmax_recip, compute_dtype=compute_dtype)

    attn_hm = pl.pallas_call(
        kernel,
        out_shape=jax.ShapeDtypeStruct((B * n_heads, N_q, d_head), inter_dtype),
        grid_spec=pltpu.PrefetchScalarGridSpec(
            num_scalar_prefetch=0,
            grid=(B * n_heads, n_qt),
            in_specs=[
                pl.BlockSpec((1, tq, d_head), lambda bh, q: (bh, q, 0)),
                # K/V block index is constant over the inner q axis -> fetched
                # once per (batch, head) and reused across all q tiles.
                pl.BlockSpec((1, N_k, d_head), lambda bh, q: (bh, 0, 0)),
                pl.BlockSpec((1, N_v, d_head), lambda bh, q: (bh, 0, 0)),
            ],
            out_specs=pl.BlockSpec((1, tq, d_head), lambda bh, q: (bh, q, 0)),
        ),
        compiler_params=pltpu.CompilerParams(
            # No cross-step accumulation -> every axis independent: both
            # TensorCores get work even for B == 1.
            dimension_semantics=("parallel", "parallel"),
            vmem_limit_bytes=_vmem_limit_bytes(est)),
    )(qph, kph, vph)

    # Concatenate heads (layout plumbing) and apply the output projection as
    # ONE dense (rows, E) @ (E, E) matmul with VMEM-resident W_o.
    attn = jnp.transpose(attn_hm.reshape(B, n_heads, N_q, d_head),
                         (0, 2, 1, 3)).reshape(B, N_q, E)
    return _linear(attn, wo_t, bo, out_dtype=queries.dtype,
                   compute_dtype=compute_dtype)


# --------------------------------------------------------------------------
# Reference & demo.
# --------------------------------------------------------------------------
def init_linear_params(key, embed_dim):
    """Deterministic init mimicking nn.Linear defaults (uniform ±1/sqrt(fan_in))."""
    bound = 1.0 / math.sqrt(embed_dim)
    kw, kb = jax.random.split(key)
    w = jax.random.uniform(kw, (embed_dim, embed_dim), jnp.float32, -bound, bound)
    b = jax.random.uniform(kb, (embed_dim,), jnp.float32, -bound, bound)
    return w, b


def reference_mha(queries, keys, values, params, *, n_heads, apply_mask=False):
    """Pure-JAX reference mirroring the PyTorch forward."""
    B, N_q, E = queries.shape
    d_head = E // n_heads
    lin = lambda x, w, b: x @ w.T + b
    Q = lin(queries, params['wq'], params['bq']).reshape(B, N_q, n_heads, d_head).transpose(0, 2, 1, 3)
    K = lin(keys, params['wk'], params['bk']).reshape(B, -1, n_heads, d_head).transpose(0, 2, 1, 3)
    V = lin(values, params['wv'], params['bv']).reshape(B, -1, n_heads, d_head).transpose(0, 2, 1, 3)
    scores = (Q @ jnp.swapaxes(K, -2, -1)) / math.sqrt(d_head)
    if apply_mask:
        mask = jnp.where(jnp.triu(jnp.ones((N_q, N_q)), k=1) == 1, -jnp.inf, 0.0)
        scores = scores + mask[None, None]
    w = jax.nn.softmax(scores, axis=-1)
    attn = (w @ V).transpose(0, 2, 1, 3).reshape(B, N_q, E)
    return lin(attn, params['wo'], params['bo'])


if __name__ == "__main__":
    B, N, E, H = 2, 8, 32, 4

    key = jax.random.PRNGKey(0)
    kq, kk, kv, k1, k2, k3, k4 = jax.random.split(key, 7)

    queries = jax.random.normal(kq, (B, N, E), jnp.float32)
    keys_in = jax.random.normal(kk, (B, N, E), jnp.float32)
    values_in = jax.random.normal(kv, (B, N, E), jnp.float32)

    wq, bq = init_linear_params(k1, E)
    wk, bk = init_linear_params(k2, E)
    wv, bv = init_linear_params(k3, E)
    wo, bo = init_linear_params(k4, E)
    params = dict(wq=wq, bq=bq, wk=wk, bk=bk, wv=wv, bv=bv, wo=wo, bo=bo)

    ref = reference_mha(queries, keys_in, values_in, params, n_heads=H)
    ref_m = reference_mha(queries, keys_in, values_in, params, n_heads=H,
                          apply_mask=True)

    # fp32 path with exact softmax reciprocal: tight parity check.
    out_fp32 = multi_head_attention(queries, keys_in, values_in, params,
                                    n_heads=H, apply_mask=False,
                                    compute_dtype=jnp.float32,
                                    approx_softmax_recip=False)
    out_fp32 = jax.block_until_ready(out_fp32)
    assert out_fp32.shape == (B, N, E)
    assert jnp.allclose(out_fp32, ref, atol=2e-3, rtol=2e-3)

    # Default bf16-MXU path (fp32 accumulation / softmax stats): looser check.
    out_bf16 = multi_head_attention(queries, keys_in, values_in, params,
                                    n_heads=H, apply_mask=False)
    out_bf16 = jax.block_until_ready(out_bf16)
    assert jnp.allclose(out_bf16, ref, atol=5e-2, rtol=5e-2)

    # Causal-masked self-attention-shaped case (bf16 path).
    out_mask = multi_head_attention(queries, keys_in, values_in, params,
                                    n_heads=H, apply_mask=True)
    out_mask = jax.block_until_ready(out_mask)
    assert jnp.allclose(out_mask, ref_m, atol=5e-2, rtol=5e-2)

    print("KERNEL_OK")
</pallas_src>

<mosaic_0001>
module attributes {stable_mosaic.version = 11 : i64} {
  func.func @_linear_kernel(%arg0: i32, %arg1: i32, %arg2: memref<1x8x32xf32, #tpu.memory_space<vmem>>, %arg3: memref<32x32xf32, #tpu.memory_space<vmem>>, %arg4: memref<1x32xf32, #tpu.memory_space<vmem>>, %arg5: memref<1x8x32xf32, #tpu.memory_space<vmem>>) attributes {dimension_semantics = [#tpu.dimension_semantics<parallel>, #tpu.dimension_semantics<parallel>], iteration_bounds = array<i64: 2, 1>, scalar_prefetch = 0 : i64, scratch_operands = 0 : i64, tpu.core_type = #tpu.core_type<tc>, window_params = [{transform_indices = @transform_0, window_bounds = array<i64: 1, 8, 32>}, {pipeline_mode = #tpu.pipeline_mode<synchronous>, transform_indices = @transform_1, window_bounds = array<i64: 32, 32>}, {pipeline_mode = #tpu.pipeline_mode<synchronous>, transform_indices = @transform_2, window_bounds = array<i64: 1, 32>}, {transform_indices = @transform_3, window_bounds = array<i64: 1, 8, 32>}]} {
    %c0 = arith.constant 0 : index
    %c0_0 = arith.constant 0 : index
    %c0_1 = arith.constant 0 : index
    %0 = vector.load %arg2[%c0, %c0_0, %c0_1] : memref<1x8x32xf32, #tpu.memory_space<vmem>>, vector<1x8x32xf32>
    %1 = vector.shape_cast %0 : vector<1x8x32xf32> to vector<8x32xf32>
    %c0_2 = arith.constant 0 : index
    %c0_3 = arith.constant 0 : index
    %2 = vector.load %arg3[%c0_2, %c0_3] : memref<32x32xf32, #tpu.memory_space<vmem>>, vector<32x32xf32>
    %cst = arith.constant dense<0.000000e+00> : vector<8x32xf32>
    %3 = tpu.matmul %1, %2, %cst {dimension_numbers = #tpu.dot_dimension_numbers<[1], [0], [0], [1], [0, 0, 1, 1], [], []>} : vector<8x32xf32>, vector<32x32xf32>, vector<8x32xf32> -> vector<8x32xf32>
    %c0_4 = arith.constant 0 : index
    %c0_5 = arith.constant 0 : index
    %4 = vector.load %arg4[%c0_4, %c0_5] : memref<1x32xf32, #tpu.memory_space<vmem>>, vector<1x32xf32>
    %5 = vector.broadcast %4 : vector<1x32xf32> to vector<8x32xf32>
    %6 = arith.addf %3, %5 : vector<8x32xf32>
    %c0_6 = arith.constant 0 : index
    %c0_7 = arith.constant 0 : index
    %c0_8 = arith.constant 0 : index
    %7 = vector.load %arg5[%c0_6, %c0_7, %c0_8] : memref<1x8x32xf32, #tpu.memory_space<vmem>>, vector<1x8x32xf32>
    %8 = vector.shape_cast %7 : vector<1x8x32xf32> to vector<8x32xf32>
    %9 = vector.shape_cast %6 : vector<8x32xf32> to vector<1x8x32xf32>
    tpu.vector_store %arg5[%c0_6, %c0_7, %c0_8], %9 {strides = array<i32>} : memref<1x8x32xf32, #tpu.memory_space<vmem>>, vector<1x8x32xf32>,
    return
  }
  func.func @transform_0(%arg0: i32, %arg1: i32) -> (i32, i32, i32) {
    %c0_i32 = arith.constant 0 : i32
    %c0_i32_0 = arith.constant 0 : i32
    return %arg0, %arg1, %c0_i32 : i32, i32, i32
  }
  func.func @transform_1(%arg0: i32, %arg1: i32) -> (i32, i32) {
    %c0_i32 = arith.constant 0 : i32
    %c0_i32_0 = arith.constant 0 : i32
    %c0_i32_1 = arith.constant 0 : i32
    return %c0_i32, %c0_i32_0 : i32, i32
  }
  func.func @transform_2(%arg0: i32, %arg1: i32) -> (i32, i32) {
    %c0_i32 = arith.constant 0 : i32
    %c0_i32_0 = arith.constant 0 : i32
    %c0_i32_1 = arith.constant 0 : i32
    return %c0_i32, %c0_i32_0 : i32, i32
  }
  func.func @transform_3(%arg0: i32, %arg1: i32) -> (i32, i32, i32) {
    %c0_i32 = arith.constant 0 : i32
    %c0_i32_0 = arith.constant 0 : i32
    return %arg0, %arg1, %c0_i32 : i32, i32, i32
  }
}

</mosaic_0001>

<llo_original>
// kernel: tpu_custom_call.1
$region0: #{tpu_custom_call.1}
  #allocation0 [shape = 'u32[]', space=smem, size = 0x4, offset = 0x4, fixed_abs, tag = 'smem constant byte address 0x4 - core index']
  #allocation1 [shape = 'u32[144,128]{1,0:T(1,128)}', space=vmem, size = 0x12000, scoped, tag = 'internal scratch']
  %s0 = inlined_call_operand.hbm [shape: f32[2,8,32], index: 0, kind: input, shape index: {}]
  %s1 = inlined_call_operand.hbm [shape: f32[32,32], index: 1, kind: input, shape index: {}]
  %s2 = inlined_call_operand.vmem [shape: f32[1,32], index: 2, kind: input, shape index: {}]
  %s3 = inlined_call_operand.hbm [shape: f32[2,8,32], index: 3, kind: output, shape index: {}]
  %s4 = sld [smem:[#allocation0]]
  $region53: #{tpu_custom_call.1} parent=0
    _
  %s6 = ssub.s32 1, %s4
  %s7 = scalar_select 0, %s6, %s4
  $region1: #{tpu_custom_call.1} parent=0
    #allocation2 [shape = 'u8[8192]{0}', space=vmem, size = 0x2000, scoped, tag = 'input window, operand 0']
    #allocation3 [shape = 's32[2]{0}', space=sflag, size = 0x8, scoped, tag = 'scoped memory for tpu_custom_call.1']
    #allocation4 [shape = 's32[2]{0}', space=sflag, size = 0x8, scoped, tag = 'scoped memory for tpu_custom_call.1']
    #allocation5 [shape = 'u8[16384]{0}', space=vmem, size = 0x4000, scoped, tag = 'input window, operand 1, single buffered']
    #allocation6 [shape = 's32[1]{0}', space=sflag, size = 0x4, scoped, tag = 'scoped memory for tpu_custom_call.1']
    #allocation7 [shape = 'u8[8192]{0}', space=vmem, size = 0x2000, scoped, tag = 'output window, operand 0']
    %8 = vsyncpa [#allocation3], 0
    %s9 = scalar_lea.sflag [#allocation3], 1
    %10 = vsyncpa %s9, 0
    %11 = vsyncpa [#allocation6], 0
    %12 = vsyncpa [#allocation4], 0
    %s13 = scalar_lea.sflag [#allocation4], 1
    %14 = vsyncpa %s13, 0
    loop: start=0, step=1, limit=4
    $region2: #{tpu_custom_call.1} parent=1 // loop_pre_header
      _
    $region3: #{tpu_custom_call.1} parent=1 // loop_header
      %s16 = sphi 0, %s20
      %p17 = scmp.ge.s32.totalorder %s16, 4
      %s23 = sphi 0, %s35
      %s24 = sphi 0, %s31
      %s25 = sphi 0, %s23
      %s26 = sphi 0, %s24
      %s27 = sphi 0, %s25
      %s28 = sphi 0, %s26
      %s40 = sphi 0, %s42
      %s43 = sphi 0, %s40
      %s44 = sphi 0, %s43
      %s60 = sphi 0, %s44
      %s64 = sphi 0, %s64
      %s66 = sphi 0, %s64
      %s67 = sphi 0, %s66
      %s81 = sphi 0, %s67
      %s85 = sphi 0, %s85
      %s87 = sphi 0, %s85
      %s88 = sphi 0, %s87
      %s102 = sphi 0, %s88
      %s110 = sphi 0, %s112
      %s113 = sphi 0, %s110
      %s114 = sphi 0, %s113
      %s130 = sphi 0, %s114
    $region4: #{tpu_custom_call.1} parent=1 // loop_header_branch
      %19 = sbr.rel (%p17) target = $region8
    $region5: #{tpu_custom_call.1} parent=1 // loop_body
      %s21 = ssub.s32 %s16, 1
      %s22 = ssub.s32 %s16, 2
      %s29 = sadd.s32 1, %s24
      %p30 = scmp.ge.s32.totalorder %s29, 1
      %s31 = scalar_select %p30, 0, %s29
      %s32 = sadd.s32 1, %s23
      %s33 = scalar_select %p30, %s32, %s23
      %p34 = scmp.ge.s32.totalorder %s33, 2
      %s35 = scalar_select %p34, 0, %s33
      %s36 = ssub.s32 %s23, %s35
      %s37 = ssub.s32 %s24, %s31
      %s38 = sor.u32 %s36, %s37
      %p39 = scmp.eq.s32.totalorder %s38, 0
      %s41 = sadd.s32 %s40, 1
      %s42 = scalar_select %p39, %s40, %s41
      %p45 = pneg %p39
      %p46 = scmp.eq.s32.totalorder %s16, 1
      %p47 = por %p45, %p46
      %p48 = scmp.ne.s32.totalorder %s40, %s43
      %p49 = scmp.eq.s32.totalorder %s16, 0
      %p50 = por %p48, %p49
      %p51 = scmp.ne.s32.totalorder %s40, %s43
      %p52 = scmp.eq.s32.totalorder %s21, 1
      %p53 = por %p51, %p52
      %p54 = scmp.ne.s32.totalorder %s43, %s44
      %p55 = scmp.eq.s32.totalorder %s21, 0
      %p56 = por %p54, %p55
      %p57 = scmp.ne.s32.totalorder %s43, %s44
      %p58 = scmp.eq.s32.totalorder %s22, 1
      %p59 = por %p57, %p58
      %p61 = scmp.ne.s32.totalorder %s44, %s60
      %p62 = scmp.eq.s32.totalorder %s22, 0
      %p63 = por %p61, %p62
      %s65 = sadd.s32 %s64, 1
      %p68 = scmp.eq.s32.totalorder %s16, 1
      %p69 = scmp.ne.s32.totalorder %s64, %s66
      %p70 = scmp.eq.s32.totalorder %s16, 0
      %p71 = por %p69, %p70
      %p72 = scmp.ne.s32.totalorder %s64, %s66
      %p73 = scmp.eq.s32.totalorder %s21, 1
      %p74 = por %p72, %p73
      %p75 = scmp.ne.s32.totalorder %s66, %s67
      %p76 = scmp.eq.s32.totalorder %s21, 0
      %p77 = por %p75, %p76
      %p78 = scmp.ne.s32.totalorder %s66, %s67
      %p79 = scmp.eq.s32.totalorder %s22, 1
      %p80 = por %p78, %p79
      %p82 = scmp.ne.s32.totalorder %s67, %s81
      %p83 = scmp.eq.s32.totalorder %s22, 0
      %p84 = por %p82, %p83
      %s86 = sadd.s32 %s85, 1
      %p89 = scmp.eq.s32.totalorder %s16, 1
      %p90 = scmp.ne.s32.totalorder %s85, %s87
      %p91 = scmp.eq.s32.totalorder %s16, 0
      %p92 = por %p90, %p91
      %p93 = scmp.ne.s32.totalorder %s85, %s87
      %p94 = scmp.eq.s32.totalorder %s21, 1
      %p95 = por %p93, %p94
      %p96 = scmp.ne.s32.totalorder %s87, %s88
      %p97 = scmp.eq.s32.totalorder %s21, 0
      %p98 = por %p96, %p97
      %p99 = scmp.ne.s32.totalorder %s87, %s88
      %p100 = scmp.eq.s32.totalorder %s22, 1
      %p101 = por %p99, %p100
      %p103 = scmp.ne.s32.totalorder %s88, %s102
      %p104 = scmp.eq.s32.totalorder %s22, 0
      %p105 = por %p103, %p104
      %s106 = ssub.s32 %s23, %s35
      %s107 = ssub.s32 %s24, %s31
      %s108 = sor.u32 %s106, %s107
      %p109 = scmp.eq.s32.totalorder %s108, 0
      %s111 = sadd.s32 %s110, 1
      %s112 = scalar_select %p109, %s110, %s111
      %p115 = pneg %p109
      %p116 = scmp.eq.s32.totalorder %s16, 1
      %p117 = por %p115, %p116
      %p118 = scmp.ne.s32.totalorder %s110, %s113
      %p119 = scmp.eq.s32.totalorder %s16, 0
      %p120 = por %p118, %p119
      %p121 = scmp.ne.s32.totalorder %s110, %s113
      %p122 = scmp.eq.s32.totalorder %s21, 1
      %p123 = por %p121, %p122
      %p124 = scmp.ne.s32.totalorder %s113, %s114
      %p125 = scmp.eq.s32.totalorder %s21, 0
      %p126 = por %p124, %p125
      %p127 = scmp.ne.s32.totalorder %s113, %s114
      %p128 = scmp.eq.s32.totalorder %s22, 1
      %p129 = por %p127, %p128
      %p131 = scmp.ne.s32.totalorder %s114, %s130
      %p132 = scmp.eq.s32.totalorder %s22, 0
      %p133 = por %p131, %p132
      %p134 = scmp.le.s32.totalorder 1, %s16
      %p135 = scmp.lt.s32.totalorder %s16, 3
      %p136 = pnand %p134, %p135
      %p137 = pneg %p136
      // Predicated region
      $region9: #{tpu_custom_call.1} parent=5 // pred_check
        _
      $region10: #{tpu_custom_call.1} parent=5 // pred_check_branch
        %139 = sbr.rel (%p136) target = $region12
      $region11: #{tpu_custom_call.1} parent=5 // pred_region
        %s140 = ssub.s32 %s16, 1
        // Predicated region
        $region13: #{tpu_custom_call.1} parent=11 // pred_check
          %p141 = pneg %p77
        $region14: #{tpu_custom_call.1} parent=11 // pred_check_branch
          %143 = sbr.rel (%p141) target = $region16
        $region15: #{tpu_custom_call.1} parent=11 // pred_region
          %s145 = ssub.s32 512, 512
          %146 = vsyncadd [#allocation6], %s145
          %s147 = sshll.u32 [#allocation5], 4
          %s148 = int_to_ptr.vmem [resolvable:$true] %s147
          %153 = dma.hbm_to_vmem [thread:$0]  %s1, 512, %s148, [#allocation6], 128, 128, 8
        $region16: #{tpu_custom_call.1} parent=11 // pred_fallthru
          _
        // Predicated region
        $region17: #{tpu_custom_call.1} parent=11 // pred_check
          %p154 = pneg %p98
        $region18: #{tpu_custom_call.1} parent=11 // pred_check_branch
          %156 = sbr.rel (%p154) target = $region20
        $region19: #{tpu_custom_call.1} parent=11 // pred_region
          _
        $region20: #{tpu_custom_call.1} parent=11 // pred_fallthru
          _
      $region12: #{tpu_custom_call.1} parent=5 // pred_fallthru
        _
      %p157 = scmp.lt.s32.totalorder %s16, 2
      // Predicated region
      $region21: #{tpu_custom_call.1} parent=5 // pred_check
        %p158 = pneg %p157
      $region22: #{tpu_custom_call.1} parent=5 // pred_check_branch
        %160 = sbr.rel (%p158) target = $region24
      $region23: #{tpu_custom_call.1} parent=5 // pred_region
        // Predicated region
        $region25: #{tpu_custom_call.1} parent=23 // pred_check
          %p161 = pneg %p50
        $region26: #{tpu_custom_call.1} parent=23 // pred_check_branch
          %163 = sbr.rel (%p161) target = $region28
        $region27: #{tpu_custom_call.1} parent=23 // pred_region
          %s164 = sand.u32 %s40, 1
          %s165 = scalar_lea.sflag [#allocation3], %s164
          %s166 = sand.u32 %s40, 1
          %s167 = smul.addr %s166, 8
          %s168 = scalar_lea.vmem [#allocation2], %s167
          %s170 = ssub.s32 128, 128
          %171 = vsyncadd %s165, %s170
          %s172 = sadd.s32 %s24, %s23
          %s173 = smul.addr %s172, 128
          %s174 = scalar_lea.hbm %s0, %s173
          %s176 = sshll.u32 %s168, 4
          %s177 = int_to_ptr.vmem [resolvable:$true] %s176
          %179 = dma.hbm_to_vmem [thread:$0]  %s174, 128, %s177, %s165
        $region28: #{tpu_custom_call.1} parent=23 // pred_fallthru
          _
      $region24: #{tpu_custom_call.1} parent=5 // pred_fallthru
        _
      %p180 = scmp.le.s32.totalorder 1, %s16
      %p181 = scmp.lt.s32.totalorder %s16, 3
      %p182 = pnand %p180, %p181
      %p183 = pneg %p182
      // Predicated region
      $region29: #{tpu_custom_call.1} parent=5 // pred_check
        _
      $region30: #{tpu_custom_call.1} parent=5 // pred_check_branch
        %185 = sbr.rel (%p182) target = $region32
      $region31: #{tpu_custom_call.1} parent=5 // pred_region
        %s186 = ssub.s32 %s16, 1
        %s187 = sand.u32 %s43, 1
        %s188 = scalar_lea.sflag [#allocation3], %s187
        %s189 = sand.u32 %s43, 1
        %s190 = smul.addr %s189, 8
        %s191 = scalar_lea.vmem [#allocation2], %s190
        // Predicated region
        $region33: #{tpu_custom_call.1} parent=31 // pred_check
          %p192 = pneg %p56
        $region34: #{tpu_custom_call.1} parent=31 // pred_check_branch
          %194 = sbr.rel (%p192) target = $region36
        $region35: #{tpu_custom_call.1} parent=31 // pred_region
          %195 = dma.done %s188, 128
        $region36: #{tpu_custom_call.1} parent=31 // pred_fallthru
          _
        // Predicated region
        $region37: #{tpu_custom_call.1} parent=31 // pred_check
          %p196 = pneg %p77
        $region38: #{tpu_custom_call.1} parent=31 // pred_check_branch
          %198 = sbr.rel (%p196) target = $region40
        $region39: #{tpu_custom_call.1} parent=31 // pred_region
          %199 = dma.done [#allocation6], 512
        $region40: #{tpu_custom_call.1} parent=31 // pred_fallthru
          _
        %s200 = sand.u32 %s43, 1
        %s201 = scalar_lea.sflag [#allocation3], %s200
        %s202 = sand.u32 %s43, 1
        %s203 = smul.addr %s202, 8
        %s204 = scalar_lea.vmem [#allocation2], %s203
        %p205 = pneg %p56
        %p206 = pneg %p53
        %p207 = pneg %p77
        %p208 = pneg %p74
        %p209 = pneg %p98
        %p210 = pneg %p95
        %p211 = pneg %p126
        %p212 = pneg %p123
        %s213 = sand.u32 %s113, 1
        %s214 = scalar_lea.sflag [#allocation4], %s213
        %s215 = sand.u32 %s113, 1
        %s216 = smul.addr %s215, 8
        %s217 = scalar_lea.vmem [#allocation7], %s216
        %v218 = vld [vmem:[%s191] sm:$0xff]
        %v219 = vld [vmem:[#allocation5] sm:$0xff]
        %v220 = vld [vmem:[#allocation5 + $0x8] sm:$0xff]
        %v221 = vld [vmem:[#allocation5 + $0x10] sm:$0xff]
        %v222 = vld [vmem:[#allocation5 + $0x18] sm:$0xff]
        %v223 = vld [vmem:[%s2] sm:$0x1]
        %v225 = vlaneseq
        %v226 = vshrl.u32 %v225, 7
        %v227 = vsub.s32 0, %v226
        %v228 = vrot.slane %v223, %v227
        %vm230 = vcmask 261120
        %v232 = vsel %vm230, %v218, 0
        %234 = vmatprep.subr.mxu0 0.0
        %235 = vmatpush1.msra.mxu0 %v219
        %236 = vmatprep.subr.mxu0 0.0
        %237 = vmatpush1.msra.mxu0 %v220
        %238 = vmatprep.subr.mxu0 0.0
        %239 = vmatpush1.msra.mxu0 %v221
        %240 = vmatprep.subr.mxu0 0.0
        %241 = vmatpush1.msra.mxu0 %v222
        %242 = vmatprep.subr.mxu0 0.0
        %243 = vmatpush1.msra.mxu0 0.0
        %244 = vmatprep.subr.mxu0 0.0
        %245 = vmatpush1.msra.mxu0 0.0
        %246 = vmatprep.subr.mxu0 0.0
        %247 = vmatpush1.msra.mxu0 0.0
        %248 = vmatprep.subr.mxu0 0.0
        %249 = vmatpush1.msra.mxu0 0.0
        %250 = vmatprep.subr.mxu0 0.0
        %251 = vmatpush1.msra.mxu0 0.0
        %252 = vmatprep.subr.mxu0 0.0
        %253 = vmatpush1.msra.mxu0 0.0
        %254 = vmatprep.subr.mxu0 0.0
        %255 = vmatpush1.msra.mxu0 0.0
        %256 = vmatprep.subr.mxu0 0.0
        %257 = vmatpush1.msra.mxu0 0.0
        %258 = vmatprep.subr.mxu0 0.0
        %259 = vmatpush1.msra.mxu0 0.0
        %260 = vmatprep.subr.mxu0 0.0
        %261 = vmatpush1.msra.mxu0 0.0
        %262 = vmatprep.subr.mxu0 0.0
        %263 = vmatpush1.msra.mxu0 0.0
        %264 = vmatprep.subr.mxu0 0.0
        %265 = vmatpush1.msra.mxu0 0.0
        %266 = vmatprep.subr.mxu0 0.0
        %267 = vmatpush1.msra.mxu0 0.0
        %268 = vmatprep.subr.mxu0 0.0
        %269 = vmatpush1.msra.mxu0 0.0
        %270 = vmatprep.subr.mxu0 0.0
        %271 = vmatpush1.msra.mxu0 0.0
        %272 = vmatprep.subr.mxu0 0.0
        %273 = vmatpush1.msra.mxu0 0.0
        %274 = vmatprep.subr.mxu0 0.0
        %275 = vmatpush1.msra.mxu0 0.0
        %276 = vmatprep.subr.mxu0 0.0
        %277 = vmatpush1.msra.mxu0 0.0
        %278 = vmatprep.subr.mxu0 0.0
        %279 = vmatpush1.msra.mxu0 0.0
        %280 = vmatprep.subr.mxu0 0.0
        %281 = vmatpush1.msra.mxu0 0.0
        %282 = vmatprep.subr.mxu0 0.0
        %283 = vmatpush1.msra.mxu0 0.0
        %284 = vmatprep.subr.mxu0 0.0
        %285 = vmatpush1.msra.mxu0 0.0
        %286 = vmatprep.subr.mxu0 0.0
        %287 = vmatpush1.msra.mxu0 0.0
        %288 = vmatprep.subr.mxu0 0.0
        %289 = vmatpush1.msra.mxu0 0.0
        %290 = vmatprep.subr.mxu0 0.0
        %291 = vmatpush1.msra.mxu0 0.0
        %292 = vmatprep.subr.mxu0 0.0
        %293 = vmatpush1.msra.mxu0 0.0
        %294 = vmatprep.subr.mxu0 0.0
        %295 = vmatpush1.msra.mxu0 0.0
        %296 = vmatprep.subr.mxu0 0.0
        %297 = vmatpush1.msra.mxu0 0.0
        %298 = vmatprep.mubr.f32.mxu0 0.0
        %299 = vmatmul.mubr.f32.gmra.mrb[0].mxu0 %v232
        %v300 = vpop.f32.mrb[0].mxu0
        %v301 = vadd.f32 %v228, %v300
        %v302 = vpop.f32.mrb[0].mxu0
        %303 = vdwg.mxu0
        %304 = vst.msk [vmem:[%s217] sm:$0xff] %vm230, %v301
        %s305 = sand.u32 %s113, 1
        %s306 = scalar_lea.sflag [#allocation4], %s305
        %s307 = sand.u32 %s113, 1
        %s308 = smul.addr %s307, 8
        %s309 = scalar_lea.vmem [#allocation7], %s308
        // Predicated region
        $region41: #{tpu_custom_call.1} parent=31 // pred_check
          %p310 = pneg %p123
        $region42: #{tpu_custom_call.1} parent=31 // pred_check_branch
          %312 = sbr.rel (%p310) target = $region44
        $region43: #{tpu_custom_call.1} parent=31 // pred_region
          %s314 = ssub.s32 128, 128
          %315 = vsyncadd %s306, %s314
          %s316 = sadd.s32 %s26, %s25
          %s317 = smul.addr %s316, 128
          %s318 = scalar_lea.hbm %s3, %s317
          %s320 = sshll.u32 %s309, 4
          %s321 = int_to_ptr.vmem [resolvable:$true] %s320
          %323 = dma.vmem_to_hbm [thread:$0]  %s321, 128, %s318, %s306
        $region44: #{tpu_custom_call.1} parent=31 // pred_fallthru
          _
      $region32: #{tpu_custom_call.1} parent=5 // pred_fallthru
        _
      %p324 = scmp.le.s32.totalorder 2, %s16
      // Predicated region
      $region45: #{tpu_custom_call.1} parent=5 // pred_check
        %p325 = pneg %p324
      $region46: #{tpu_custom_call.1} parent=5 // pred_check_branch
        %327 = sbr.rel (%p325) target = $region48
      $region47: #{tpu_custom_call.1} parent=5 // pred_region
        %s328 = ssub.s32 %s16, 2
        // Predicated region
        $region49: #{tpu_custom_call.1} parent=47 // pred_check
          %p329 = pneg %p129
        $region50: #{tpu_custom_call.1} parent=47 // pred_check_branch
          %331 = sbr.rel (%p329) target = $region52
        $region51: #{tpu_custom_call.1} parent=47 // pred_region
          %s332 = sand.u32 %s114, 1
          %s333 = scalar_lea.sflag [#allocation4], %s332
          %s334 = sand.u32 %s114, 1
          %s335 = smul.addr %s334, 8
          %s336 = scalar_lea.vmem [#allocation7], %s335
          %337 = dma.done %s333, 128
        $region52: #{tpu_custom_call.1} parent=47 // pred_fallthru
          _
      $region48: #{tpu_custom_call.1} parent=5 // pred_fallthru
        _
    $region6: #{tpu_custom_call.1} parent=1 // loop_footer
      %s20 = sadd.s32 1, %s16
    $region7: #{tpu_custom_call.1} parent=1 // loop_footer_branch
      %15 = sbr.rel target = $region3
    $region8: #{tpu_custom_call.1} parent=1 // loop_exit
      _
    %338 = vsyncpa [#allocation3], 1
    %s339 = scalar_lea.sflag [#allocation3], 1
    %340 = vsyncpa %s339, 1
    %341 = vsyncpa [#allocation6], 1
    %342 = vsyncpa [#allocation4], 1
    %s343 = scalar_lea.sflag [#allocation4], 1
    %344 = vsyncpa %s343, 1

</llo_original>
